<compile_context>
chip_gen: v6e
topology: v6e:2x2x1
jax: 0.10.0
libtpu: 0.0.40
codegen_flags: <defaults>
</compile_context>

<pallas_src>
import functools

import jax
import jax.numpy as jnp
from jax.experimental import pallas as pl
from jax.experimental.pallas import tpu as pltpu

IN_FEATURES = 28 * 28   # 784
OUT_FEATURES = 512
TM_MAX = 1024           # batch-tile cap: safe for v7x's tighter VMEM


def _round_up(x: int, m: int) -> int:
    return ((x + m - 1) // m) * m


def linear_relu_kernel(x_ref, w_ref, b_ref, o_ref):
    # x_ref: (TM, 784) bf16   w_ref: (784, 512) bf16
    # b_ref: (1, 512) f32     o_ref: (TM, 512) f32
    acc = jnp.dot(x_ref[...], w_ref[...], preferred_element_type=jnp.float32)
    acc = acc + b_ref[...]                      # bias broadcast over batch rows
    o_ref[...] = jnp.maximum(acc, 0.0).astype(o_ref.dtype)


@functools.partial(jax.jit, static_argnames=())
def neural_network1_forward(x, w, b):
    """x: (B, 1, 28, 28) or (B, 28, 28) f32. w: (784, 512). b: (512,).

    Returns (B, 512) f32 = relu(flatten(x) @ w + b), computed with bf16
    operands and f32 accumulation.
    """
    B = x.shape[0]
    x2d = x.reshape(B, -1).astype(jnp.bfloat16)          # nn.Flatten() + bf16
    w_bf = w.astype(jnp.bfloat16)
    b2d = b.reshape(1, OUT_FEATURES).astype(jnp.float32)

    # Batch tile: multiple of 8 sublanes, capped for VMEM headroom on v7x.
    tm = min(TM_MAX, _round_up(B, 8))
    bp = _round_up(B, tm)                                 # padded batch
    if bp != B:
        x2d = jnp.pad(x2d, ((0, bp - B), (0, 0)))
    grid = (bp // tm,)

    cost = pl.CostEstimate(
        flops=2 * bp * IN_FEATURES * OUT_FEATURES,
        transcendentals=0,
        bytes_accessed=(bp * IN_FEATURES * 2            # x (bf16)
                        + IN_FEATURES * OUT_FEATURES * 2  # w (bf16)
                        + OUT_FEATURES * 4                # b (f32)
                        + bp * OUT_FEATURES * 4),         # out (f32)
    )

    out = pl.pallas_call(
        linear_relu_kernel,
        out_shape=jax.ShapeDtypeStruct((bp, OUT_FEATURES), jnp.float32),
        grid=grid,
        in_specs=[
            pl.BlockSpec((tm, IN_FEATURES), lambda i: (i, 0)),          # x tile
            pl.BlockSpec((IN_FEATURES, OUT_FEATURES), lambda i: (0, 0)),  # W resident
            pl.BlockSpec((1, OUT_FEATURES), lambda i: (0, 0)),            # b resident
        ],
        out_specs=pl.BlockSpec((tm, OUT_FEATURES), lambda i: (i, 0)),
        compiler_params=pltpu.CompilerParams(
            dimension_semantics=("parallel",)),
        cost_estimate=cost,
    )(x2d, w_bf, b2d)

    return out[:B]


if __name__ == "__main__":
    key = jax.random.PRNGKey(0)
    kx, kw, kb = jax.random.split(key, 3)

    # nn.Linear(784, 512) parameters, stored transposed as (in, out) = (784, 512).
    bound = 1.0 / (IN_FEATURES ** 0.5)          # PyTorch default init range
    w = jax.random.uniform(kw, (IN_FEATURES, OUT_FEATURES),
                           minval=-bound, maxval=bound, dtype=jnp.float32)
    b = jax.random.uniform(kb, (OUT_FEATURES,),
                           minval=-bound, maxval=bound, dtype=jnp.float32)

    # Small batch, MNIST-shaped input (B, 1, 28, 28).
    x = jax.random.normal(kx, (2, 1, 28, 28), dtype=jnp.float32)

    out = neural_network1_forward(x, w, b)
    jax.block_until_ready(out)
    assert out.shape == (2, OUT_FEATURES)

    # Reference with the same bf16 operand cast + f32 accumulate (tight check).
    x2d_bf = x.reshape(2, -1).astype(jnp.bfloat16).astype(jnp.float32)
    w_bf = w.astype(jnp.bfloat16).astype(jnp.float32)
    ref_bf = jnp.maximum(x2d_bf @ w_bf + b, 0.0)
    assert jnp.allclose(out, ref_bf, atol=1e-3, rtol=1e-3)

    # Loose check against the pure-f32 math (bf16 operand rounding only).
    ref_f32 = jnp.maximum(x.reshape(2, -1) @ w + b, 0.0)
    assert jnp.allclose(out, ref_f32, atol=5e-2, rtol=5e-2)

    print("KERNEL_OK")
</pallas_src>

<mosaic_0001>
module attributes {stable_mosaic.version = 11 : i64} {
  func.func @linear_relu_kernel(%arg0: i32, %arg1: memref<8x784xbf16, #tpu.memory_space<vmem>>, %arg2: memref<784x512xbf16, #tpu.memory_space<vmem>>, %arg3: memref<1x512xf32, #tpu.memory_space<vmem>>, %arg4: memref<8x512xf32, #tpu.memory_space<vmem>>) attributes {dimension_semantics = [#tpu.dimension_semantics<parallel>], iteration_bounds = array<i64: 1>, scalar_prefetch = 0 : i64, scratch_operands = 0 : i64, tpu.core_type = #tpu.core_type<tc>, window_params = [{transform_indices = @transform_0, window_bounds = array<i64: 8, 784>}, {pipeline_mode = #tpu.pipeline_mode<synchronous>, transform_indices = @transform_1, window_bounds = array<i64: 784, 512>}, {pipeline_mode = #tpu.pipeline_mode<synchronous>, transform_indices = @transform_2, window_bounds = array<i64: 1, 512>}, {transform_indices = @transform_3, window_bounds = array<i64: 8, 512>}]} {
    %c0 = arith.constant 0 : index
    %c0_0 = arith.constant 0 : index
    %0 = vector.load %arg1[%c0, %c0_0] : memref<8x784xbf16, #tpu.memory_space<vmem>>, vector<8x784xbf16>
    %c0_1 = arith.constant 0 : index
    %c0_2 = arith.constant 0 : index
    %1 = vector.load %arg2[%c0_1, %c0_2] : memref<784x512xbf16, #tpu.memory_space<vmem>>, vector<784x512xbf16>
    %cst = arith.constant dense<0.000000e+00> : vector<8x512xf32>
    %2 = tpu.matmul %0, %1, %cst {dimension_numbers = #tpu.dot_dimension_numbers<[1], [0], [0], [1], [0, 0, 1, 1], [], []>} : vector<8x784xbf16>, vector<784x512xbf16>, vector<8x512xf32> -> vector<8x512xf32>
    %c0_3 = arith.constant 0 : index
    %c0_4 = arith.constant 0 : index
    %3 = vector.load %arg3[%c0_3, %c0_4] : memref<1x512xf32, #tpu.memory_space<vmem>>, vector<1x512xf32>
    %4 = vector.broadcast %3 : vector<1x512xf32> to vector<8x512xf32>
    %5 = arith.addf %2, %4 : vector<8x512xf32>
    %cst_5 = arith.constant 0.000000e+00 : f32
    %6 = vector.broadcast %cst_5 : f32 to vector<8x512xf32>
    %7 = arith.maximumf %5, %6 : vector<8x512xf32>
    %c0_6 = arith.constant 0 : index
    %c0_7 = arith.constant 0 : index
    %8 = vector.load %arg4[%c0_6, %c0_7] : memref<8x512xf32, #tpu.memory_space<vmem>>, vector<8x512xf32>
    tpu.vector_store %arg4[%c0_6, %c0_7], %7 {strides = array<i32>} : memref<8x512xf32, #tpu.memory_space<vmem>>, vector<8x512xf32>,
    return
  }
  func.func @transform_0(%arg0: i32) -> (i32, i32) {
    %c0_i32 = arith.constant 0 : i32
    %c0_i32_0 = arith.constant 0 : i32
    return %arg0, %c0_i32 : i32, i32
  }
  func.func @transform_1(%arg0: i32) -> (i32, i32) {
    %c0_i32 = arith.constant 0 : i32
    %c0_i32_0 = arith.constant 0 : i32
    %c0_i32_1 = arith.constant 0 : i32
    return %c0_i32, %c0_i32_0 : i32, i32
  }
  func.func @transform_2(%arg0: i32) -> (i32, i32) {
    %c0_i32 = arith.constant 0 : i32
    %c0_i32_0 = arith.constant 0 : i32
    %c0_i32_1 = arith.constant 0 : i32
    return %c0_i32, %c0_i32_0 : i32, i32
  }
  func.func @transform_3(%arg0: i32) -> (i32, i32) {
    %c0_i32 = arith.constant 0 : i32
    %c0_i32_0 = arith.constant 0 : i32
    return %arg0, %c0_i32 : i32, i32
  }
}

</mosaic_0001>

<llo_original>
// kernel: neural_network1_forward.1
$region0: #{neural_network1_forward.1}
  #allocation0 [shape = 'u32[]', space=smem, size = 0x4, offset = 0x4, fixed_abs, tag = 'smem constant byte address 0x4 - core index']
  #allocation1 [shape = 'u32[144,128]{1,0:T(1,128)}', space=vmem, size = 0x12000, scoped, tag = 'internal scratch']
  %s0 = inlined_call_operand.vmem [shape: bf16[8,784], index: 0, kind: input, shape index: {}]
  %s1 = inlined_call_operand.vmem [shape: bf16[784,512], index: 1, kind: input, shape index: {}]
  %s2 = inlined_call_operand.vmem [shape: f32[1,512], index: 2, kind: input, shape index: {}]
  %s3 = inlined_call_operand.vmem [shape: f32[8,512], index: 3, kind: output, shape index: {}]
  %s4 = sld [smem:[#allocation0]]
  $region22: #{neural_network1_forward.1} parent=0
    _
  %s6 = ssub.s32 1, %s4
  %s7 = scalar_select 0, %s6, %s4
  // Predicated region
  $region2: #{neural_network1_forward.1} parent=0 // pred_check
    _
  $region3: #{neural_network1_forward.1} parent=0 // pred_check_branch
    %9 = sbr.rel (0) target = $region5
  $region4: #{neural_network1_forward.1} parent=0 // pred_region
    _
  $region5: #{neural_network1_forward.1} parent=0 // pred_fallthru
    _
  // Predicated region
  $region6: #{neural_network1_forward.1} parent=0 // pred_check
    _
  $region7: #{neural_network1_forward.1} parent=0 // pred_check_branch
    %11 = sbr.rel (0) target = $region9
  $region8: #{neural_network1_forward.1} parent=0 // pred_region
    _
  $region9: #{neural_network1_forward.1} parent=0 // pred_fallthru
    _
  // Predicated region
  $region10: #{neural_network1_forward.1} parent=0 // pred_check
    _
  $region11: #{neural_network1_forward.1} parent=0 // pred_check_branch
    %13 = sbr.rel (0) target = $region13
  $region12: #{neural_network1_forward.1} parent=0 // pred_region
    _
  $region13: #{neural_network1_forward.1} parent=0 // pred_fallthru
    _
  %v15 = vld [vmem:[%s0] sm:$0xff]
  %v16 = vld [vmem:[%s0 + $0x8] sm:$0xff]
  %v17 = vld [vmem:[%s0 + $0x10] sm:$0xff]
  %v18 = vld [vmem:[%s0 + $0x18] sm:$0xf]
  %v19 = vld [vmem:[%s1] sm:$0xff]
  %v20 = vld [vmem:[%s1 + $0x8] sm:$0xff]
  %v21 = vld [vmem:[%s1 + $0x10] sm:$0xff]
  %v22 = vld [vmem:[%s1 + $0x18] sm:$0xff]
  %v23 = vld [vmem:[%s1 + $0x20] sm:$0xff]
  %v24 = vld [vmem:[%s1 + $0x28] sm:$0xff]
  %v25 = vld [vmem:[%s1 + $0x30] sm:$0xff]
  %v26 = vld [vmem:[%s1 + $0x38] sm:$0xff]
  %v27 = vld [vmem:[%s1 + $0x40] sm:$0xff]
  %v28 = vld [vmem:[%s1 + $0x48] sm:$0xff]
  %v29 = vld [vmem:[%s1 + $0x50] sm:$0xff]
  %v30 = vld [vmem:[%s1 + $0x58] sm:$0xff]
  %v31 = vld [vmem:[%s1 + $0x60] sm:$0xff]
  %v32 = vld [vmem:[%s1 + $0x68] sm:$0xff]
  %v33 = vld [vmem:[%s1 + $0x70] sm:$0xff]
  %v34 = vld [vmem:[%s1 + $0x78] sm:$0xff]
  %v35 = vld [vmem:[%s1 + $0x80] sm:$0xff]
  %v36 = vld [vmem:[%s1 + $0x88] sm:$0xff]
  %v37 = vld [vmem:[%s1 + $0x90] sm:$0xff]
  %v38 = vld [vmem:[%s1 + $0x98] sm:$0xff]
  %v39 = vld [vmem:[%s1 + $0xa0] sm:$0xff]
  %v40 = vld [vmem:[%s1 + $0xa8] sm:$0xff]
  %v41 = vld [vmem:[%s1 + $0xb0] sm:$0xff]
  %v42 = vld [vmem:[%s1 + $0xb8] sm:$0xff]
  %v43 = vld [vmem:[%s1 + $0xc0] sm:$0xff]
  %v44 = vld [vmem:[%s1 + $0xc8] sm:$0xff]
  %v45 = vld [vmem:[%s1 + $0xd0] sm:$0xff]
  %v46 = vld [vmem:[%s1 + $0xd8] sm:$0xff]
  %v47 = vld [vmem:[%s1 + $0xe0] sm:$0xff]
  %v48 = vld [vmem:[%s1 + $0xe8] sm:$0xff]
  %v49 = vld [vmem:[%s1 + $0xf0] sm:$0xff]
  %v50 = vld [vmem:[%s1 + $0xf8] sm:$0xff]
  %v51 = vld [vmem:[%s1 + $0x100] sm:$0xff]
  %v52 = vld [vmem:[%s1 + $0x108] sm:$0xff]
  %v53 = vld [vmem:[%s1 + $0x110] sm:$0xff]
  %v54 = vld [vmem:[%s1 + $0x118] sm:$0xff]
  %v55 = vld [vmem:[%s1 + $0x120] sm:$0xff]
  %v56 = vld [vmem:[%s1 + $0x128] sm:$0xff]
  %v57 = vld [vmem:[%s1 + $0x130] sm:$0xff]
  %v58 = vld [vmem:[%s1 + $0x138] sm:$0xff]
  %v59 = vld [vmem:[%s1 + $0x140] sm:$0xff]
  %v60 = vld [vmem:[%s1 + $0x148] sm:$0xff]
  %v61 = vld [vmem:[%s1 + $0x150] sm:$0xff]
  %v62 = vld [vmem:[%s1 + $0x158] sm:$0xff]
  %v63 = vld [vmem:[%s1 + $0x160] sm:$0xff]
  %v64 = vld [vmem:[%s1 + $0x168] sm:$0xff]
  %v65 = vld [vmem:[%s1 + $0x170] sm:$0xff]
  %v66 = vld [vmem:[%s1 + $0x178] sm:$0xff]
  %v67 = vld [vmem:[%s1 + $0x180] sm:$0xff]
  %v68 = vld [vmem:[%s1 + $0x188] sm:$0xff]
  %v69 = vld [vmem:[%s1 + $0x190] sm:$0xff]
  %v70 = vld [vmem:[%s1 + $0x198] sm:$0xff]
  %v71 = vld [vmem:[%s1 + $0x1a0] sm:$0xff]
  %v72 = vld [vmem:[%s1 + $0x1a8] sm:$0xff]
  %v73 = vld [vmem:[%s1 + $0x1b0] sm:$0xff]
  %v74 = vld [vmem:[%s1 + $0x1b8] sm:$0xff]
  %v75 = vld [vmem:[%s1 + $0x1c0] sm:$0xff]
  %v76 = vld [vmem:[%s1 + $0x1c8] sm:$0xff]
  %v77 = vld [vmem:[%s1 + $0x1d0] sm:$0xff]
  %v78 = vld [vmem:[%s1 + $0x1d8] sm:$0xff]
  %v79 = vld [vmem:[%s1 + $0x1e0] sm:$0xff]
  %v80 = vld [vmem:[%s1 + $0x1e8] sm:$0xff]
  %v81 = vld [vmem:[%s1 + $0x1f0] sm:$0xff]
  %v82 = vld [vmem:[%s1 + $0x1f8] sm:$0xff]
  %v83 = vld [vmem:[%s1 + $0x200] sm:$0xff]
  %v84 = vld [vmem:[%s1 + $0x208] sm:$0xff]
  %v85 = vld [vmem:[%s1 + $0x210] sm:$0xff]
  %v86 = vld [vmem:[%s1 + $0x218] sm:$0xff]
  %v87 = vld [vmem:[%s1 + $0x220] sm:$0xff]
  %v88 = vld [vmem:[%s1 + $0x228] sm:$0xff]
  %v89 = vld [vmem:[%s1 + $0x230] sm:$0xff]
  %v90 = vld [vmem:[%s1 + $0x238] sm:$0xff]
  %v91 = vld [vmem:[%s1 + $0x240] sm:$0xff]
  %v92 = vld [vmem:[%s1 + $0x248] sm:$0xff]
  %v93 = vld [vmem:[%s1 + $0x250] sm:$0xff]
  %v94 = vld [vmem:[%s1 + $0x258] sm:$0xff]
  %v95 = vld [vmem:[%s1 + $0x260] sm:$0xff]
  %v96 = vld [vmem:[%s1 + $0x268] sm:$0xff]
  %v97 = vld [vmem:[%s1 + $0x270] sm:$0xff]
  %v98 = vld [vmem:[%s1 + $0x278] sm:$0xff]
  %v99 = vld [vmem:[%s1 + $0x280] sm:$0xff]
  %v100 = vld [vmem:[%s1 + $0x288] sm:$0xff]
  %v101 = vld [vmem:[%s1 + $0x290] sm:$0xff]
  %v102 = vld [vmem:[%s1 + $0x298] sm:$0xff]
  %v103 = vld [vmem:[%s1 + $0x2a0] sm:$0xff]
  %v104 = vld [vmem:[%s1 + $0x2a8] sm:$0xff]
  %v105 = vld [vmem:[%s1 + $0x2b0] sm:$0xff]
  %v106 = vld [vmem:[%s1 + $0x2b8] sm:$0xff]
  %v107 = vld [vmem:[%s1 + $0x2c0] sm:$0xff]
  %v108 = vld [vmem:[%s1 + $0x2c8] sm:$0xff]
  %v109 = vld [vmem:[%s1 + $0x2d0] sm:$0xff]
  %v110 = vld [vmem:[%s1 + $0x2d8] sm:$0xff]
  %v111 = vld [vmem:[%s1 + $0x2e0] sm:$0xff]
  %v112 = vld [vmem:[%s1 + $0x2e8] sm:$0xff]
  %v113 = vld [vmem:[%s1 + $0x2f0] sm:$0xff]
  %v114 = vld [vmem:[%s1 + $0x2f8] sm:$0xff]
  %v115 = vld [vmem:[%s1 + $0x300] sm:$0xff]
  %v116 = vld [vmem:[%s1 + $0x308] sm:$0xff]
  %v117 = vld [vmem:[%s1 + $0x310] sm:$0xff]
  %v118 = vld [vmem:[%s1 + $0x318] sm:$0xff]
  %v119 = vld [vmem:[%s1 + $0x320] sm:$0xff]
  %v120 = vld [vmem:[%s1 + $0x328] sm:$0xff]
  %v121 = vld [vmem:[%s1 + $0x330] sm:$0xff]
  %v122 = vld [vmem:[%s1 + $0x338] sm:$0xff]
  %v123 = vld [vmem:[%s1 + $0x340] sm:$0xff]
  %v124 = vld [vmem:[%s1 + $0x348] sm:$0xff]
  %v125 = vld [vmem:[%s1 + $0x350] sm:$0xff]
  %v126 = vld [vmem:[%s1 + $0x358] sm:$0xff]
  %v127 = vld [vmem:[%s1 + $0x360] sm:$0xff]
  %v128 = vld [vmem:[%s1 + $0x368] sm:$0xff]
  %v129 = vld [vmem:[%s1 + $0x370] sm:$0xff]
  %v130 = vld [vmem:[%s1 + $0x378] sm:$0xff]
  %v131 = vld [vmem:[%s1 + $0x380] sm:$0xff]
  %v132 = vld [vmem:[%s1 + $0x388] sm:$0xff]
  %v133 = vld [vmem:[%s1 + $0x390] sm:$0xff]
  %v134 = vld [vmem:[%s1 + $0x398] sm:$0xff]
  %v135 = vld [vmem:[%s1 + $0x3a0] sm:$0xff]
  %v136 = vld [vmem:[%s1 + $0x3a8] sm:$0xff]
  %v137 = vld [vmem:[%s1 + $0x3b0] sm:$0xff]
  %v138 = vld [vmem:[%s1 + $0x3b8] sm:$0xff]
  %v139 = vld [vmem:[%s1 + $0x3c0] sm:$0xff]
  %v140 = vld [vmem:[%s1 + $0x3c8] sm:$0xff]
  %v141 = vld [vmem:[%s1 + $0x3d0] sm:$0xff]
  %v142 = vld [vmem:[%s1 + $0x3d8] sm:$0xff]
  %v143 = vld [vmem:[%s1 + $0x3e0] sm:$0xff]
  %v144 = vld [vmem:[%s1 + $0x3e8] sm:$0xff]
  %v145 = vld [vmem:[%s1 + $0x3f0] sm:$0xff]
  %v146 = vld [vmem:[%s1 + $0x3f8] sm:$0xff]
  %v147 = vld [vmem:[%s1 + $0x400] sm:$0xff]
  %v148 = vld [vmem:[%s1 + $0x408] sm:$0xff]
  %v149 = vld [vmem:[%s1 + $0x410] sm:$0xff]
  %v150 = vld [vmem:[%s1 + $0x418] sm:$0xff]
  %v151 = vld [vmem:[%s1 + $0x420] sm:$0xff]
  %v152 = vld [vmem:[%s1 + $0x428] sm:$0xff]
  %v153 = vld [vmem:[%s1 + $0x430] sm:$0xff]
  %v154 = vld [vmem:[%s1 + $0x438] sm:$0xff]
  %v155 = vld [vmem:[%s1 + $0x440] sm:$0xff]
  %v156 = vld [vmem:[%s1 + $0x448] sm:$0xff]
  %v157 = vld [vmem:[%s1 + $0x450] sm:$0xff]
  %v158 = vld [vmem:[%s1 + $0x458] sm:$0xff]
  %v159 = vld [vmem:[%s1 + $0x460] sm:$0xff]
  %v160 = vld [vmem:[%s1 + $0x468] sm:$0xff]
  %v161 = vld [vmem:[%s1 + $0x470] sm:$0xff]
  %v162 = vld [vmem:[%s1 + $0x478] sm:$0xff]
  %v163 = vld [vmem:[%s1 + $0x480] sm:$0xff]
  %v164 = vld [vmem:[%s1 + $0x488] sm:$0xff]
  %v165 = vld [vmem:[%s1 + $0x490] sm:$0xff]
  %v166 = vld [vmem:[%s1 + $0x498] sm:$0xff]
  %v167 = vld [vmem:[%s1 + $0x4a0] sm:$0xff]
  %v168 = vld [vmem:[%s1 + $0x4a8] sm:$0xff]
  %v169 = vld [vmem:[%s1 + $0x4b0] sm:$0xff]
  %v170 = vld [vmem:[%s1 + $0x4b8] sm:$0xff]
  %v171 = vld [vmem:[%s1 + $0x4c0] sm:$0xff]
  %v172 = vld [vmem:[%s1 + $0x4c8] sm:$0xff]
  %v173 = vld [vmem:[%s1 + $0x4d0] sm:$0xff]
  %v174 = vld [vmem:[%s1 + $0x4d8] sm:$0xff]
  %v175 = vld [vmem:[%s1 + $0x4e0] sm:$0xff]
  %v176 = vld [vmem:[%s1 + $0x4e8] sm:$0xff]
  %v177 = vld [vmem:[%s1 + $0x4f0] sm:$0xff]
  %v178 = vld [vmem:[%s1 + $0x4f8] sm:$0xff]
  %v179 = vld [vmem:[%s1 + $0x500] sm:$0xff]
  %v180 = vld [vmem:[%s1 + $0x508] sm:$0xff]
  %v181 = vld [vmem:[%s1 + $0x510] sm:$0xff]
  %v182 = vld [vmem:[%s1 + $0x518] sm:$0xff]
  %v183 = vld [vmem:[%s1 + $0x520] sm:$0xff]
  %v184 = vld [vmem:[%s1 + $0x528] sm:$0xff]
  %v185 = vld [vmem:[%s1 + $0x530] sm:$0xff]
  %v186 = vld [vmem:[%s1 + $0x538] sm:$0xff]
  %v187 = vld [vmem:[%s1 + $0x540] sm:$0xff]
  %v188 = vld [vmem:[%s1 + $0x548] sm:$0xff]
  %v189 = vld [vmem:[%s1 + $0x550] sm:$0xff]
  %v190 = vld [vmem:[%s1 + $0x558] sm:$0xff]
  %v191 = vld [vmem:[%s1 + $0x560] sm:$0xff]
  %v192 = vld [vmem:[%s1 + $0x568] sm:$0xff]
  %v193 = vld [vmem:[%s1 + $0x570] sm:$0xff]
  %v194 = vld [vmem:[%s1 + $0x578] sm:$0xff]
  %v195 = vld [vmem:[%s1 + $0x580] sm:$0xff]
  %v196 = vld [vmem:[%s1 + $0x588] sm:$0xff]
  %v197 = vld [vmem:[%s1 + $0x590] sm:$0xff]
  %v198 = vld [vmem:[%s1 + $0x598] sm:$0xff]
  %v199 = vld [vmem:[%s1 + $0x5a0] sm:$0xff]
  %v200 = vld [vmem:[%s1 + $0x5a8] sm:$0xff]
  %v201 = vld [vmem:[%s1 + $0x5b0] sm:$0xff]
  %v202 = vld [vmem:[%s1 + $0x5b8] sm:$0xff]
  %v203 = vld [vmem:[%s1 + $0x5c0] sm:$0xff]
  %v204 = vld [vmem:[%s1 + $0x5c8] sm:$0xff]
  %v205 = vld [vmem:[%s1 + $0x5d0] sm:$0xff]
  %v206 = vld [vmem:[%s1 + $0x5d8] sm:$0xff]
  %v207 = vld [vmem:[%s1 + $0x5e0] sm:$0xff]
  %v208 = vld [vmem:[%s1 + $0x5e8] sm:$0xff]
  %v209 = vld [vmem:[%s1 + $0x5f0] sm:$0xff]
  %v210 = vld [vmem:[%s1 + $0x5f8] sm:$0xff]
  %v211 = vld [vmem:[%s1 + $0x600] sm:$0xff]
  %v212 = vld [vmem:[%s1 + $0x608] sm:$0xff]
  %v213 = vld [vmem:[%s1 + $0x610] sm:$0xff]
  %v214 = vld [vmem:[%s1 + $0x618] sm:$0xff]
  %v215 = vld [vmem:[%s2] sm:$0xf]
  %v217 = vlaneseq
  %v218 = vshrl.u32 %v217, 7
  %v219 = vsub.s32 0, %v218
  %v220 = vrot.slane %v215, %v219
  %v221 = vlaneseq
  %v222 = vshrl.u32 %v221, 7
  %v223 = vsub.s32 1, %v222
  %v224 = vrot.slane %v215, %v223
  %v225 = vlaneseq
  %v226 = vshrl.u32 %v225, 7
  %v227 = vsub.s32 2, %v226
  %v228 = vrot.slane %v215, %v227
  %v229 = vlaneseq
  %v230 = vshrl.u32 %v229, 7
  %v231 = vsub.s32 3, %v230
  %v232 = vrot.slane %v215, %v231
  %v241 = vunpack.c.l.b16 %v15
  %v242 = vunpack.c.h.b16 %v15
  %v243 = vunpack.c.l.b16 %v16
  %v244 = vunpack.c.h.b16 %v16
  %v245 = vunpack.c.l.b16 %v17
  %v246 = vunpack.c.h.b16 %v17
  %v247 = vunpack.c.l.b16 %v18
  %v248 = vpack.c.b16 %v241, %v241
  %v249 = vpack.c.b16 %v242, %v242
  %v250 = vpack.c.b16 %v243, %v243
  %v251 = vpack.c.b16 %v244, %v244
  %v252 = vpack.c.b16 %v245, %v245
  %v253 = vpack.c.b16 %v246, %v246
  %v254 = vpack.c.b16 %v247, %v247
  %v457 = vunpack.c.l.b16 %v19
  %v458 = vunpack.c.h.b16 %v19
  %v459 = vunpack.c.l.b16 %v20
  %v460 = vunpack.c.h.b16 %v20
  %v461 = vunpack.c.l.b16 %v21
  %v462 = vunpack.c.h.b16 %v21
  %v463 = vunpack.c.l.b16 %v22
  %v464 = vunpack.c.h.b16 %v22
  %v465 = vunpack.c.l.b16 %v23
  %v466 = vunpack.c.h.b16 %v23
  %v467 = vunpack.c.l.b16 %v24
  %v468 = vunpack.c.h.b16 %v24
  %v469 = vunpack.c.l.b16 %v25
  %v470 = vunpack.c.h.b16 %v25
  %v471 = vunpack.c.l.b16 %v26
  %v472 = vunpack.c.h.b16 %v26
  %v473 = vunpack.c.l.b16 %v27
  %v474 = vunpack.c.h.b16 %v27
  %v475 = vunpack.c.l.b16 %v28
  %v476 = vunpack.c.h.b16 %v28
  %v477 = vunpack.c.l.b16 %v29
  %v478 = vunpack.c.h.b16 %v29
  %v479 = vunpack.c.l.b16 %v30
  %v480 = vunpack.c.h.b16 %v30
  %v481 = vunpack.c.l.b16 %v31
  %v482 = vunpack.c.h.b16 %v31
  %v483 = vunpack.c.l.b16 %v32
  %v484 = vunpack.c.h.b16 %v32
  %v485 = vunpack.c.l.b16 %v33
  %v486 = vunpack.c.h.b16 %v33
  %v487 = vunpack.c.l.b16 %v34
  %v488 = vunpack.c.h.b16 %v34
  %v489 = vunpack.c.l.b16 %v35
  %v490 = vunpack.c.h.b16 %v35
  %v491 = vunpack.c.l.b16 %v36
  %v492 = vunpack.c.h.b16 %v36
  %v493 = vunpack.c.l.b16 %v37
  %v494 = vunpack.c.h.b16 %v37
  %v495 = vunpack.c.l.b16 %v38
  %v496 = vunpack.c.h.b16 %v38
  %v497 = vunpack.c.l.b16 %v39
  %v498 = vunpack.c.h.b16 %v39
  %v499 = vunpack.c.l.b16 %v40
  %v500 = vunpack.c.h.b16 %v40
  %v501 = vunpack.c.l.b16 %v41
  %v502 = vunpack.c.h.b16 %v41
  %v503 = vunpack.c.l.b16 %v42
  %v504 = vunpack.c.h.b16 %v42
  %v505 = vunpack.c.l.b16 %v43
  %v506 = vunpack.c.h.b16 %v43
  %v507 = vunpack.c.l.b16 %v44
  %v508 = vunpack.c.h.b16 %v44
  %v509 = vunpack.c.l.b16 %v45
  %v510 = vunpack.c.h.b16 %v45
  %v511 = vunpack.c.l.b16 %v46
  %v512 = vunpack.c.h.b16 %v46
  %v513 = vunpack.c.l.b16 %v47
  %v514 = vunpack.c.h.b16 %v47
  %v515 = vunpack.c.l.b16 %v48
  %v516 = vunpack.c.h.b16 %v48
  %v517 = vunpack.c.l.b16 %v49
  %v518 = vunpack.c.h.b16 %v49
  %v519 = vunpack.c.l.b16 %v50
  %v520 = vunpack.c.h.b16 %v50
  %v521 = vunpack.c.l.b16 %v51
  %v522 = vunpack.c.h.b16 %v51
  %v523 = vunpack.c.l.b16 %v52
  %v524 = vunpack.c.h.b16 %v52
  %v525 = vunpack.c.l.b16 %v53
  %v526 = vunpack.c.h.b16 %v53
  %v527 = vunpack.c.l.b16 %v54
  %v528 = vunpack.c.h.b16 %v54
  %v529 = vunpack.c.l.b16 %v55
  %v530 = vunpack.c.h.b16 %v55
  %v531 = vunpack.c.l.b16 %v56
  %v532 = vunpack.c.h.b16 %v56
  %v533 = vunpack.c.l.b16 %v57
  %v534 = vunpack.c.h.b16 %v57
  %v535 = vunpack.c.l.b16 %v58
  %v536 = vunpack.c.h.b16 %v58
  %v537 = vunpack.c.l.b16 %v59
  %v538 = vunpack.c.h.b16 %v59
  %v539 = vunpack.c.l.b16 %v60
  %v540 = vunpack.c.h.b16 %v60
  %v541 = vunpack.c.l.b16 %v61
  %v542 = vunpack.c.h.b16 %v61
  %v543 = vunpack.c.l.b16 %v62
  %v544 = vunpack.c.h.b16 %v62
  %v545 = vunpack.c.l.b16 %v63
  %v546 = vunpack.c.h.b16 %v63
  %v547 = vunpack.c.l.b16 %v64
  %v548 = vunpack.c.h.b16 %v64
  %v549 = vunpack.c.l.b16 %v65
  %v550 = vunpack.c.h.b16 %v65
  %v551 = vunpack.c.l.b16 %v66
  %v552 = vunpack.c.h.b16 %v66
  %v553 = vunpack.c.l.b16 %v67
  %v554 = vunpack.c.h.b16 %v67
  %v555 = vunpack.c.l.b16 %v68
  %v556 = vunpack.c.h.b16 %v68
  %v557 = vunpack.c.l.b16 %v69
  %v558 = vunpack.c.h.b16 %v69
  %v559 = vunpack.c.l.b16 %v70
  %v560 = vunpack.c.h.b16 %v70
  %v561 = vunpack.c.l.b16 %v71
  %v562 = vunpack.c.h.b16 %v71
  %v563 = vunpack.c.l.b16 %v72
  %v564 = vunpack.c.h.b16 %v72
  %v565 = vunpack.c.l.b16 %v73
  %v566 = vunpack.c.h.b16 %v73
  %v567 = vunpack.c.l.b16 %v74
  %v568 = vunpack.c.h.b16 %v74
  %v569 = vunpack.c.l.b16 %v75
  %v570 = vunpack.c.h.b16 %v75
  %v571 = vunpack.c.l.b16 %v76
  %v572 = vunpack.c.h.b16 %v76
  %v573 = vunpack.c.l.b16 %v77
  %v574 = vunpack.c.h.b16 %v77
  %v575 = vunpack.c.l.b16 %v78
  %v576 = vunpack.c.h.b16 %v78
  %v577 = vunpack.c.l.b16 %v79
  %v578 = vunpack.c.h.b16 %v79
  %v579 = vunpack.c.l.b16 %v80
  %v580 = vunpack.c.h.b16 %v80
  %v581 = vunpack.c.l.b16 %v81
  %v582 = vunpack.c.h.b16 %v81
  %v583 = vunpack.c.l.b16 %v82
  %v584 = vunpack.c.h.b16 %v82
  %v585 = vunpack.c.l.b16 %v83
  %v586 = vunpack.c.h.b16 %v83
  %v587 = vunpack.c.l.b16 %v84
  %v588 = vunpack.c.h.b16 %v84
  %v589 = vunpack.c.l.b16 %v85
  %v590 = vunpack.c.h.b16 %v85
  %v591 = vunpack.c.l.b16 %v86
  %v592 = vunpack.c.h.b16 %v86
  %v593 = vunpack.c.l.b16 %v87
  %v594 = vunpack.c.h.b16 %v87
  %v595 = vunpack.c.l.b16 %v88
  %v596 = vunpack.c.h.b16 %v88
  %v597 = vunpack.c.l.b16 %v89
  %v598 = vunpack.c.h.b16 %v89
  %v599 = vunpack.c.l.b16 %v90
  %v600 = vunpack.c.h.b16 %v90
  %v601 = vunpack.c.l.b16 %v91
  %v602 = vunpack.c.h.b16 %v91
  %v603 = vunpack.c.l.b16 %v92
  %v604 = vunpack.c.h.b16 %v92
  %v605 = vunpack.c.l.b16 %v93
  %v606 = vunpack.c.h.b16 %v93
  %v607 = vunpack.c.l.b16 %v94
  %v608 = vunpack.c.h.b16 %v94
  %v609 = vunpack.c.l.b16 %v95
  %v610 = vunpack.c.h.b16 %v95
  %v611 = vunpack.c.l.b16 %v96
  %v612 = vunpack.c.h.b16 %v96
  %v613 = vunpack.c.l.b16 %v97
  %v614 = vunpack.c.h.b16 %v97
  %v615 = vunpack.c.l.b16 %v98
  %v616 = vunpack.c.h.b16 %v98
  %v617 = vunpack.c.l.b16 %v99
  %v618 = vunpack.c.h.b16 %v99
  %v619 = vunpack.c.l.b16 %v100
  %v620 = vunpack.c.h.b16 %v100
  %v621 = vunpack.c.l.b16 %v101
  %v622 = vunpack.c.h.b16 %v101
  %v623 = vunpack.c.l.b16 %v102
  %v624 = vunpack.c.h.b16 %v102
  %v625 = vunpack.c.l.b16 %v103
  %v626 = vunpack.c.h.b16 %v103
  %v627 = vunpack.c.l.b16 %v104
  %v628 = vunpack.c.h.b16 %v104
  %v629 = vunpack.c.l.b16 %v105
  %v630 = vunpack.c.h.b16 %v105
  %v631 = vunpack.c.l.b16 %v106
  %v632 = vunpack.c.h.b16 %v106
  %v633 = vunpack.c.l.b16 %v107
  %v634 = vunpack.c.h.b16 %v107
  %v635 = vunpack.c.l.b16 %v108
  %v636 = vunpack.c.h.b16 %v108
  %v637 = vunpack.c.l.b16 %v109
  %v638 = vunpack.c.h.b16 %v109
  %v639 = vunpack.c.l.b16 %v110
  %v640 = vunpack.c.h.b16 %v110
  %v641 = vunpack.c.l.b16 %v111
  %v642 = vunpack.c.h.b16 %v111
  %v643 = vunpack.c.l.b16 %v112
  %v644 = vunpack.c.h.b16 %v112
  %v645 = vunpack.c.l.b16 %v113
  %v646 = vunpack.c.h.b16 %v113
  %v647 = vunpack.c.l.b16 %v114
  %v648 = vunpack.c.h.b16 %v114
  %v649 = vunpack.c.l.b16 %v115
  %v650 = vunpack.c.h.b16 %v115
  %v651 = vunpack.c.l.b16 %v116
  %v652 = vunpack.c.h.b16 %v116
  %v653 = vunpack.c.l.b16 %v117
  %v654 = vunpack.c.h.b16 %v117
  %v655 = vunpack.c.l.b16 %v118
  %v656 = vunpack.c.h.b16 %v118
  %v657 = vunpack.c.l.b16 %v119
  %v658 = vunpack.c.h.b16 %v119
  %v659 = vunpack.c.l.b16 %v120
  %v660 = vunpack.c.h.b16 %v120
  %v661 = vunpack.c.l.b16 %v121
  %v662 = vunpack.c.h.b16 %v121
  %v663 = vunpack.c.l.b16 %v122
  %v664 = vunpack.c.h.b16 %v122
  %v665 = vunpack.c.l.b16 %v123
  %v666 = vunpack.c.h.b16 %v123
  %v667 = vunpack.c.l.b16 %v124
  %v668 = vunpack.c.h.b16 %v124
  %v669 = vunpack.c.l.b16 %v125
  %v670 = vunpack.c.h.b16 %v125
  %v671 = vunpack.c.l.b16 %v126
  %v672 = vunpack.c.h.b16 %v126
  %v673 = vunpack.c.l.b16 %v127
  %v674 = vunpack.c.h.b16 %v127
  %v675 = vunpack.c.l.b16 %v128
  %v676 = vunpack.c.h.b16 %v128
  %v677 = vunpack.c.l.b16 %v129
  %v678 = vunpack.c.h.b16 %v129
  %v679 = vunpack.c.l.b16 %v130
  %v680 = vunpack.c.h.b16 %v130
  %v681 = vunpack.c.l.b16 %v131
  %v682 = vunpack.c.h.b16 %v131
  %v683 = vunpack.c.l.b16 %v132
  %v684 = vunpack.c.h.b16 %v132
  %v685 = vunpack.c.l.b16 %v133
  %v686 = vunpack.c.h.b16 %v133
  %v687 = vunpack.c.l.b16 %v134
  %v688 = vunpack.c.h.b16 %v134
  %v689 = vunpack.c.l.b16 %v135
  %v690 = vunpack.c.h.b16 %v135
  %v691 = vunpack.c.l.b16 %v136
  %v692 = vunpack.c.h.b16 %v136
  %v693 = vunpack.c.l.b16 %v137
  %v694 = vunpack.c.h.b16 %v137
  %v695 = vunpack.c.l.b16 %v138
  %v696 = vunpack.c.h.b16 %v138
  %v697 = vunpack.c.l.b16 %v139
  %v698 = vunpack.c.h.b16 %v139
  %v699 = vunpack.c.l.b16 %v140
  %v700 = vunpack.c.h.b16 %v140
  %v701 = vunpack.c.l.b16 %v141
  %v702 = vunpack.c.h.b16 %v141
  %v703 = vunpack.c.l.b16 %v142
  %v704 = vunpack.c.h.b16 %v142
  %v705 = vunpack.c.l.b16 %v143
  %v706 = vunpack.c.h.b16 %v143
  %v707 = vunpack.c.l.b16 %v144
  %v708 = vunpack.c.h.b16 %v144
  %v709 = vunpack.c.l.b16 %v145
  %v710 = vunpack.c.h.b16 %v145
  %v711 = vunpack.c.l.b16 %v146
  %v712 = vunpack.c.h.b16 %v146
  %v713 = vunpack.c.l.b16 %v147
  %v714 = vunpack.c.h.b16 %v147
  %v715 = vunpack.c.l.b16 %v148
  %v716 = vunpack.c.h.b16 %v148
  %v717 = vunpack.c.l.b16 %v149
  %v718 = vunpack.c.h.b16 %v149
  %v719 = vunpack.c.l.b16 %v150
  %v720 = vunpack.c.h.b16 %v150
  %v721 = vunpack.c.l.b16 %v151
  %v722 = vunpack.c.h.b16 %v151
  %v723 = vunpack.c.l.b16 %v152
  %v724 = vunpack.c.h.b16 %v152
  %v725 = vunpack.c.l.b16 %v153
  %v726 = vunpack.c.h.b16 %v153
  %v727 = vunpack.c.l.b16 %v154
  %v728 = vunpack.c.h.b16 %v154
  %v729 = vunpack.c.l.b16 %v155
  %v730 = vunpack.c.h.b16 %v155
  %v731 = vunpack.c.l.b16 %v156
  %v732 = vunpack.c.h.b16 %v156
  %v733 = vunpack.c.l.b16 %v157
  %v734 = vunpack.c.h.b16 %v157
  %v735 = vunpack.c.l.b16 %v158
  %v736 = vunpack.c.h.b16 %v158
  %v737 = vunpack.c.l.b16 %v159
  %v738 = vunpack.c.h.b16 %v159
  %v739 = vunpack.c.l.b16 %v160
  %v740 = vunpack.c.h.b16 %v160
  %v741 = vunpack.c.l.b16 %v161
  %v742 = vunpack.c.h.b16 %v161
  %v743 = vunpack.c.l.b16 %v162
  %v744 = vunpack.c.h.b16 %v162
  %v745 = vunpack.c.l.b16 %v163
  %v746 = vunpack.c.h.b16 %v163
  %v747 = vunpack.c.l.b16 %v164
  %v748 = vunpack.c.h.b16 %v164
  %v749 = vunpack.c.l.b16 %v165
  %v750 = vunpack.c.h.b16 %v165
  %v751 = vunpack.c.l.b16 %v166
  %v752 = vunpack.c.h.b16 %v166
  %v753 = vunpack.c.l.b16 %v167
  %v754 = vunpack.c.h.b16 %v167
  %v755 = vunpack.c.l.b16 %v168
  %v756 = vunpack.c.h.b16 %v168
  %v757 = vunpack.c.l.b16 %v169
  %v758 = vunpack.c.h.b16 %v169
  %v759 = vunpack.c.l.b16 %v170
  %v760 = vunpack.c.h.b16 %v170
  %v761 = vunpack.c.l.b16 %v171
  %v762 = vunpack.c.h.b16 %v171
  %v763 = vunpack.c.l.b16 %v172
  %v764 = vunpack.c.h.b16 %v172
  %v765 = vunpack.c.l.b16 %v173
  %v766 = vunpack.c.h.b16 %v173
  %v767 = vunpack.c.l.b16 %v174
  %v768 = vunpack.c.h.b16 %v174
  %v769 = vunpack.c.l.b16 %v175
  %v770 = vunpack.c.h.b16 %v175
  %v771 = vunpack.c.l.b16 %v176
  %v772 = vunpack.c.h.b16 %v176
  %v773 = vunpack.c.l.b16 %v177
  %v774 = vunpack.c.h.b16 %v177
  %v775 = vunpack.c.l.b16 %v178
  %v776 = vunpack.c.h.b16 %v178
  %v777 = vunpack.c.l.b16 %v179
  %v778 = vunpack.c.h.b16 %v179
  %v779 = vunpack.c.l.b16 %v180
  %v780 = vunpack.c.h.b16 %v180
  %v781 = vunpack.c.l.b16 %v181
  %v782 = vunpack.c.h.b16 %v181
  %v783 = vunpack.c.l.b16 %v182
  %v784 = vunpack.c.h.b16 %v182
  %v785 = vunpack.c.l.b16 %v183
  %v786 = vunpack.c.h.b16 %v183
  %v787 = vunpack.c.l.b16 %v184
  %v788 = vunpack.c.h.b16 %v184
  %v789 = vunpack.c.l.b16 %v185
  %v790 = vunpack.c.h.b16 %v185
  %v791 = vunpack.c.l.b16 %v186
  %v792 = vunpack.c.h.b16 %v186
  %v793 = vunpack.c.l.b16 %v187
  %v794 = vunpack.c.h.b16 %v187
  %v795 = vunpack.c.l.b16 %v188
  %v796 = vunpack.c.h.b16 %v188
  %v797 = vunpack.c.l.b16 %v189
  %v798 = vunpack.c.h.b16 %v189
  %v799 = vunpack.c.l.b16 %v190
  %v800 = vunpack.c.h.b16 %v190
  %v801 = vunpack.c.l.b16 %v191
  %v802 = vunpack.c.h.b16 %v191
  %v803 = vunpack.c.l.b16 %v192
  %v804 = vunpack.c.h.b16 %v192
  %v805 = vunpack.c.l.b16 %v193
  %v806 = vunpack.c.h.b16 %v193
  %v807 = vunpack.c.l.b16 %v194
  %v808 = vunpack.c.h.b16 %v194
  %v809 = vunpack.c.l.b16 %v195
  %v810 = vunpack.c.h.b16 %v195
  %v811 = vunpack.c.l.b16 %v196
  %v812 = vunpack.c.h.b16 %v196
  %v813 = vunpack.c.l.b16 %v197
  %v814 = vunpack.c.h.b16 %v197
  %v815 = vunpack.c.l.b16 %v198
  %v816 = vunpack.c.h.b16 %v198
  %v817 = vunpack.c.l.b16 %v199
  %v818 = vunpack.c.h.b16 %v199
  %v819 = vunpack.c.l.b16 %v200
  %v820 = vunpack.c.h.b16 %v200
  %v821 = vunpack.c.l.b16 %v201
  %v822 = vunpack.c.h.b16 %v201
  %v823 = vunpack.c.l.b16 %v202
  %v824 = vunpack.c.h.b16 %v202
  %v825 = vunpack.c.l.b16 %v203
  %v826 = vunpack.c.h.b16 %v203
  %v827 = vunpack.c.l.b16 %v204
  %v828 = vunpack.c.h.b16 %v204
  %v829 = vunpack.c.l.b16 %v205
  %v830 = vunpack.c.h.b16 %v205
  %v831 = vunpack.c.l.b16 %v206
  %v832 = vunpack.c.h.b16 %v206
  %v833 = vunpack.c.l.b16 %v207
  %v834 = vunpack.c.h.b16 %v207
  %v835 = vunpack.c.l.b16 %v208
  %v836 = vunpack.c.h.b16 %v208
  %v837 = vunpack.c.l.b16 %v209
  %v838 = vunpack.c.h.b16 %v209
  %v839 = vunpack.c.l.b16 %v210
  %v840 = vunpack.c.h.b16 %v210
  %v841 = vunpack.c.l.b16 %v211
  %v842 = vunpack.c.h.b16 %v211
  %v843 = vunpack.c.l.b16 %v212
  %v844 = vunpack.c.h.b16 %v212
  %v845 = vunpack.c.l.b16 %v213
  %v846 = vunpack.c.h.b16 %v213
  %v847 = vunpack.c.l.b16 %v214
  %v848 = vunpack.c.h.b16 %v214
  %v849 = vpack.c.b16 %v461, %v457
  %v850 = vpack.c.b16 %v462, %v458
  %v851 = vpack.c.b16 %v463, %v459
  %v852 = vpack.c.b16 %v464, %v460
  %v853 = vpack.c.b16 %v469, %v465
  %v854 = vpack.c.b16 %v470, %v466
  %v855 = vpack.c.b16 %v471, %v467
  %v856 = vpack.c.b16 %v472, %v468
  %v857 = vpack.c.b16 %v477, %v473
  %v858 = vpack.c.b16 %v478, %v474
  %v859 = vpack.c.b16 %v479, %v475
  %v860 = vpack.c.b16 %v480, %v476
  %v861 = vpack.c.b16 %v485, %v481
  %v862 = vpack.c.b16 %v486, %v482
  %v863 = vpack.c.b16 %v487, %v483
  %v864 = vpack.c.b16 %v488, %v484
  %v865 = vpack.c.b16 %v493, %v489
  %v866 = vpack.c.b16 %v494, %v490
  %v867 = vpack.c.b16 %v495, %v491
  %v868 = vpack.c.b16 %v496, %v492
  %v869 = vpack.c.b16 %v501, %v497
  %v870 = vpack.c.b16 %v502, %v498
  %v871 = vpack.c.b16 %v503, %v499
  %v872 = vpack.c.b16 %v504, %v500
  %v873 = vpack.c.b16 %v509, %v505
  %v874 = vpack.c.b16 %v510, %v506
  %v875 = vpack.c.b16 %v511, %v507
  %v876 = vpack.c.b16 %v512, %v508
  %v877 = vpack.c.b16 %v517, %v513
  %v878 = vpack.c.b16 %v518, %v514
  %v879 = vpack.c.b16 %v519, %v515
  %v880 = vpack.c.b16 %v520, %v516
  %v881 = vpack.c.b16 %v525, %v521
  %v882 = vpack.c.b16 %v526, %v522
  %v883 = vpack.c.b16 %v527, %v523
  %v884 = vpack.c.b16 %v528, %v524
  %v885 = vpack.c.b16 %v533, %v529
  %v886 = vpack.c.b16 %v534, %v530
  %v887 = vpack.c.b16 %v535, %v531
  %v888 = vpack.c.b16 %v536, %v532
  %v889 = vpack.c.b16 %v541, %v537
  %v890 = vpack.c.b16 %v542, %v538
  %v891 = vpack.c.b16 %v543, %v539
  %v892 = vpack.c.b16 %v544, %v540
  %v893 = vpack.c.b16 %v549, %v545
  %v894 = vpack.c.b16 %v550, %v546
  %v895 = vpack.c.b16 %v551, %v547
  %v896 = vpack.c.b16 %v552, %v548
  %v897 = vpack.c.b16 %v557, %v553
  %v898 = vpack.c.b16 %v558, %v554
  %v899 = vpack.c.b16 %v559, %v555
  %v900 = vpack.c.b16 %v560, %v556
  %v901 = vpack.c.b16 %v565, %v561
  %v902 = vpack.c.b16 %v566, %v562
  %v903 = vpack.c.b16 %v567, %v563
  %v904 = vpack.c.b16 %v568, %v564
  %v905 = vpack.c.b16 %v573, %v569
  %v906 = vpack.c.b16 %v574, %v570
  %v907 = vpack.c.b16 %v575, %v571
  %v908 = vpack.c.b16 %v576, %v572
  %v909 = vpack.c.b16 %v581, %v577
  %v910 = vpack.c.b16 %v582, %v578
  %v911 = vpack.c.b16 %v583, %v579
  %v912 = vpack.c.b16 %v584, %v580
  %v913 = vpack.c.b16 %v589, %v585
  %v914 = vpack.c.b16 %v590, %v586
  %v915 = vpack.c.b16 %v591, %v587
  %v916 = vpack.c.b16 %v592, %v588
  %v917 = vpack.c.b16 %v597, %v593
  %v918 = vpack.c.b16 %v598, %v594
  %v919 = vpack.c.b16 %v599, %v595
  %v920 = vpack.c.b16 %v600, %v596
  %v921 = vpack.c.b16 %v605, %v601
  %v922 = vpack.c.b16 %v606, %v602
  %v923 = vpack.c.b16 %v607, %v603
  %v924 = vpack.c.b16 %v608, %v604
  %v925 = vpack.c.b16 %v613, %v609
  %v926 = vpack.c.b16 %v614, %v610
  %v927 = vpack.c.b16 %v615, %v611
  %v928 = vpack.c.b16 %v616, %v612
  %v929 = vpack.c.b16 %v621, %v617
  %v930 = vpack.c.b16 %v622, %v618
  %v931 = vpack.c.b16 %v623, %v619
  %v932 = vpack.c.b16 %v624, %v620
  %v933 = vpack.c.b16 %v629, %v625
  %v934 = vpack.c.b16 %v630, %v626
  %v935 = vpack.c.b16 %v631, %v627
  %v936 = vpack.c.b16 %v632, %v628
  %v937 = vpack.c.b16 %v637, %v633
  %v938 = vpack.c.b16 %v638, %v634
  %v939 = vpack.c.b16 %v639, %v635
  %v940 = vpack.c.b16 %v640, %v636
  %v941 = vpack.c.b16 %v645, %v641
  %v942 = vpack.c.b16 %v646, %v642
  %v943 = vpack.c.b16 %v647, %v643
  %v944 = vpack.c.b16 %v648, %v644
  %v945 = vpack.c.b16 %v653, %v649
  %v946 = vpack.c.b16 %v654, %v650
  %v947 = vpack.c.b16 %v655, %v651
  %v948 = vpack.c.b16 %v656, %v652
  %v949 = vpack.c.b16 %v661, %v657
  %v950 = vpack.c.b16 %v662, %v658
  %v951 = vpack.c.b16 %v663, %v659
  %v952 = vpack.c.b16 %v664, %v660
  %v953 = vpack.c.b16 %v669, %v665
  %v954 = vpack.c.b16 %v670, %v666
  %v955 = vpack.c.b16 %v671, %v667
  %v956 = vpack.c.b16 %v672, %v668
  %v957 = vpack.c.b16 %v677, %v673
  %v958 = vpack.c.b16 %v678, %v674
  %v959 = vpack.c.b16 %v679, %v675
  %v960 = vpack.c.b16 %v680, %v676
  %v961 = vpack.c.b16 %v685, %v681
  %v962 = vpack.c.b16 %v686, %v682
  %v963 = vpack.c.b16 %v687, %v683
  %v964 = vpack.c.b16 %v688, %v684
  %v965 = vpack.c.b16 %v693, %v689
  %v966 = vpack.c.b16 %v694, %v690
  %v967 = vpack.c.b16 %v695, %v691
  %v968 = vpack.c.b16 %v696, %v692
  %v969 = vpack.c.b16 %v701, %v697
  %v970 = vpack.c.b16 %v702, %v698
  %v971 = vpack.c.b16 %v703, %v699
  %v972 = vpack.c.b16 %v704, %v700
  %v973 = vpack.c.b16 %v709, %v705
  %v974 = vpack.c.b16 %v710, %v706
  %v975 = vpack.c.b16 %v711, %v707
  %v976 = vpack.c.b16 %v712, %v708
  %v977 = vpack.c.b16 %v717, %v713
  %v978 = vpack.c.b16 %v718, %v714
  %v979 = vpack.c.b16 %v719, %v715
  %v980 = vpack.c.b16 %v720, %v716
  %v981 = vpack.c.b16 %v725, %v721
  %v982 = vpack.c.b16 %v726, %v722
  %v983 = vpack.c.b16 %v727, %v723
  %v984 = vpack.c.b16 %v728, %v724
  %v985 = vpack.c.b16 %v733, %v729
  %v986 = vpack.c.b16 %v734, %v730
  %v987 = vpack.c.b16 %v735, %v731
  %v988 = vpack.c.b16 %v736, %v732
  %v989 = vpack.c.b16 %v741, %v737
  %v990 = vpack.c.b16 %v742, %v738
  %v991 = vpack.c.b16 %v743, %v739
  %v992 = vpack.c.b16 %v744, %v740
  %v993 = vpack.c.b16 %v749, %v745
  %v994 = vpack.c.b16 %v750, %v746
  %v995 = vpack.c.b16 %v751, %v747
  %v996 = vpack.c.b16 %v752, %v748
  %v997 = vpack.c.b16 %v757, %v753
  %v998 = vpack.c.b16 %v758, %v754
  %v999 = vpack.c.b16 %v759, %v755
  %v1000 = vpack.c.b16 %v760, %v756
  %v1001 = vpack.c.b16 %v765, %v761
  %v1002 = vpack.c.b16 %v766, %v762
  %v1003 = vpack.c.b16 %v767, %v763
  %v1004 = vpack.c.b16 %v768, %v764
  %v1005 = vpack.c.b16 %v773, %v769
  %v1006 = vpack.c.b16 %v774, %v770
  %v1007 = vpack.c.b16 %v775, %v771
  %v1008 = vpack.c.b16 %v776, %v772
  %v1009 = vpack.c.b16 %v781, %v777
  %v1010 = vpack.c.b16 %v782, %v778
  %v1011 = vpack.c.b16 %v783, %v779
  %v1012 = vpack.c.b16 %v784, %v780
  %v1013 = vpack.c.b16 %v789, %v785
  %v1014 = vpack.c.b16 %v790, %v786
  %v1015 = vpack.c.b16 %v791, %v787
  %v1016 = vpack.c.b16 %v792, %v788
  %v1017 = vpack.c.b16 %v797, %v793
  %v1018 = vpack.c.b16 %v798, %v794
  %v1019 = vpack.c.b16 %v799, %v795
  %v1020 = vpack.c.b16 %v800, %v796
  %v1021 = vpack.c.b16 %v805, %v801
  %v1022 = vpack.c.b16 %v806, %v802
  %v1023 = vpack.c.b16 %v807, %v803
  %v1024 = vpack.c.b16 %v808, %v804
  %v1025 = vpack.c.b16 %v813, %v809
  %v1026 = vpack.c.b16 %v814, %v810
  %v1027 = vpack.c.b16 %v815, %v811
  %v1028 = vpack.c.b16 %v816, %v812
  %v1029 = vpack.c.b16 %v821, %v817
  %v1030 = vpack.c.b16 %v822, %v818
  %v1031 = vpack.c.b16 %v823, %v819
  %v1032 = vpack.c.b16 %v824, %v820
  %v1033 = vpack.c.b16 %v829, %v825
  %v1034 = vpack.c.b16 %v830, %v826
  %v1035 = vpack.c.b16 %v831, %v827
  %v1036 = vpack.c.b16 %v832, %v828
  %v1037 = vpack.c.b16 %v837, %v833
  %v1038 = vpack.c.b16 %v838, %v834
  %v1039 = vpack.c.b16 %v839, %v835
  %v1040 = vpack.c.b16 %v840, %v836
  %v1041 = vpack.c.b16 %v845, %v841
  %v1042 = vpack.c.b16 %v846, %v842
  %v1043 = vpack.c.b16 %v847, %v843
  %v1044 = vpack.c.b16 %v848, %v844
  %vm1241 = vcmask 130048
  %v1243 = vsel %vm1241, %v254, 0
  %1245 = vmatprep.subr.bf16.mxu0 %v878
  %1246 = vmatpush1.bf16.msra.mxu0 %v877
  %1247 = vmatprep.subr.bf16.mxu0 %v874
  %1248 = vmatpush1.bf16.msra.mxu0 %v873
  %1249 = vmatprep.subr.bf16.mxu0 %v870
  %1250 = vmatpush1.bf16.msra.mxu0 %v869
  %1251 = vmatprep.subr.bf16.mxu0 %v866
  %1252 = vmatpush1.bf16.msra.mxu0 %v865
  %1253 = vmatprep.subr.bf16.mxu0 %v862
  %1254 = vmatpush1.bf16.msra.mxu0 %v861
  %1255 = vmatprep.subr.bf16.mxu0 %v858
  %1256 = vmatpush1.bf16.msra.mxu0 %v857
  %1257 = vmatprep.subr.bf16.mxu0 %v854
  %1258 = vmatpush1.bf16.msra.mxu0 %v853
  %1259 = vmatprep.subr.bf16.mxu0 %v850
  %1260 = vmatpush1.bf16.msra.mxu0 %v849
  %1261 = vmatprep.subr.bf16.mxu0 %v910
  %1262 = vmatpush2.bf16.msra.mxu0 %v909
  %1263 = vmatprep.subr.bf16.mxu0 %v906
  %1264 = vmatpush2.bf16.msra.mxu0 %v905
  %1265 = vmatprep.subr.bf16.mxu0 %v902
  %1266 = vmatpush2.bf16.msra.mxu0 %v901
  %1267 = vmatprep.subr.bf16.mxu0 %v898
  %1268 = vmatpush2.bf16.msra.mxu0 %v897
  %1269 = vmatprep.subr.bf16.mxu0 %v894
  %1270 = vmatpush2.bf16.msra.mxu0 %v893
  %1271 = vmatprep.subr.bf16.mxu0 %v890
  %1272 = vmatpush2.bf16.msra.mxu0 %v889
  %1273 = vmatprep.subr.bf16.mxu0 %v886
  %1274 = vmatpush2.bf16.msra.mxu0 %v885
  %1275 = vmatprep.subr.bf16.mxu0 %v882
  %1276 = vmatpush2.bf16.msra.mxu0 %v881
  %1277 = vmatprep.mubr.bf16.mxu0 %v249
  %1278 = vmatmul.mubr.bf16.gmra.mxu0 %v248
  %v1279 = vpop.f32.mrf.mxu0
  %v1280 = vadd.f32 %v220, %v1279
  %v1281 = vpop.f32.mrf.mxu0
  %v1282 = vadd.f32 %v224, %v1281
  %v1283 = vpop.f32.mrf.mxu0
  %v1284 = vpop.f32.mrf.mxu0
  %1285 = vdwg.mxu0
  %1286 = vmatprep.subr.bf16.mxu0 %v942
  %1287 = vmatpush1.bf16.msra.mxu0 %v941
  %1288 = vmatprep.subr.bf16.mxu0 %v938
  %1289 = vmatpush1.bf16.msra.mxu0 %v937
  %1290 = vmatprep.subr.bf16.mxu0 %v934
  %1291 = vmatpush1.bf16.msra.mxu0 %v933
  %1292 = vmatprep.subr.bf16.mxu0 %v930
  %1293 = vmatpush1.bf16.msra.mxu0 %v929
  %1294 = vmatprep.subr.bf16.mxu0 %v926
  %1295 = vmatpush1.bf16.msra.mxu0 %v925
  %1296 = vmatprep.subr.bf16.mxu0 %v922
  %1297 = vmatpush1.bf16.msra.mxu0 %v921
  %1298 = vmatprep.subr.bf16.mxu0 %v918
  %1299 = vmatpush1.bf16.msra.mxu0 %v917
  %1300 = vmatprep.subr.bf16.mxu0 %v914
  %1301 = vmatpush1.bf16.msra.mxu0 %v913
  %1302 = vmatprep.subr.bf16.mxu0 %v974
  %1303 = vmatpush2.bf16.msra.mxu0 %v973
  %1304 = vmatprep.subr.bf16.mxu0 %v970
  %1305 = vmatpush2.bf16.msra.mxu0 %v969
  %1306 = vmatprep.subr.bf16.mxu0 %v966
  %1307 = vmatpush2.bf16.msra.mxu0 %v965
  %1308 = vmatprep.subr.bf16.mxu0 %v962
  %1309 = vmatpush2.bf16.msra.mxu0 %v961
  %1310 = vmatprep.subr.bf16.mxu0 %v958
  %1311 = vmatpush2.bf16.msra.mxu0 %v957
  %1312 = vmatprep.subr.bf16.mxu0 %v954
  %1313 = vmatpush2.bf16.msra.mxu0 %v953
  %1314 = vmatprep.subr.bf16.mxu0 %v950
  %1315 = vmatpush2.bf16.msra.mxu0 %v949
  %1316 = vmatprep.subr.bf16.mxu0 %v946
  %1317 = vmatpush2.bf16.msra.mxu0 %v945
  %1318 = vmatprep.mubr.bf16.mxu0 %v251
  %1319 = vmatmul.mubr.bf16.gmra.mxu0 %v250
  %v1320 = vpop.f32.mrf.mxu0
  %v1321 = vadd.f32 %v1280, %v1320
  %v1322 = vpop.f32.mrf.mxu0
  %v1323 = vadd.f32 %v1282, %v1322
  %v1324 = vpop.f32.mrf.mxu0
  %v1325 = vpop.f32.mrf.mxu0
  %1326 = vdwg.mxu0
  %1327 = vmatprep.subr.bf16.mxu0 %v1006
  %1328 = vmatpush1.bf16.msra.mxu0 %v1005
  %1329 = vmatprep.subr.bf16.mxu0 %v1002
  %1330 = vmatpush1.bf16.msra.mxu0 %v1001
  %1331 = vmatprep.subr.bf16.mxu0 %v998
  %1332 = vmatpush1.bf16.msra.mxu0 %v997
  %1333 = vmatprep.subr.bf16.mxu0 %v994
  %1334 = vmatpush1.bf16.msra.mxu0 %v993
  %1335 = vmatprep.subr.bf16.mxu0 %v990
  %1336 = vmatpush1.bf16.msra.mxu0 %v989
  %1337 = vmatprep.subr.bf16.mxu0 %v986
  %1338 = vmatpush1.bf16.msra.mxu0 %v985
  %1339 = vmatprep.subr.bf16.mxu0 %v982
  %1340 = vmatpush1.bf16.msra.mxu0 %v981
  %1341 = vmatprep.subr.bf16.mxu0 %v978
  %1342 = vmatpush1.bf16.msra.mxu0 %v977
  %1343 = vmatprep.subr.bf16.mxu0 %v1038
  %1344 = vmatpush2.bf16.msra.mxu0 %v1037
  %1345 = vmatprep.subr.bf16.mxu0 %v1034
  %1346 = vmatpush2.bf16.msra.mxu0 %v1033
  %1347 = vmatprep.subr.bf16.mxu0 %v1030
  %1348 = vmatpush2.bf16.msra.mxu0 %v1029
  %1349 = vmatprep.subr.bf16.mxu0 %v1026
  %1350 = vmatpush2.bf16.msra.mxu0 %v1025
  %1351 = vmatprep.subr.bf16.mxu0 %v1022
  %1352 = vmatpush2.bf16.msra.mxu0 %v1021
  %1353 = vmatprep.subr.bf16.mxu0 %v1018
  %1354 = vmatpush2.bf16.msra.mxu0 %v1017
  %1355 = vmatprep.subr.bf16.mxu0 %v1014
  %1356 = vmatpush2.bf16.msra.mxu0 %v1013
  %1357 = vmatprep.subr.bf16.mxu0 %v1010
  %1358 = vmatpush2.bf16.msra.mxu0 %v1009
  %1359 = vmatprep.mubr.bf16.mxu0 %v253
  %1360 = vmatmul.mubr.bf16.gmra.mxu0 %v252
  %v1361 = vpop.f32.mrf.mxu0
  %v1362 = vadd.f32 %v1321, %v1361
  %v1363 = vpop.f32.mrf.mxu0
  %v1364 = vadd.f32 %v1323, %v1363
  %v1365 = vpop.f32.mrf.mxu0
  %v1366 = vpop.f32.mrf.mxu0
  %1367 = vdwg.mxu0
  %1368 = vmatprep.subr.bf16.mxu0 0
  %1369 = vmatpush1.bf16.msra.mxu0 0
  %1370 = vmatprep.subr.bf16.mxu0 0
  %1371 = vmatpush1.bf16.msra.mxu0 0
  %1372 = vmatprep.subr.bf16.mxu0 0
  %1373 = vmatpush1.bf16.msra.mxu0 0
  %1374 = vmatprep.subr.bf16.mxu0 0
  %1375 = vmatpush1.bf16.msra.mxu0 0
  %1376 = vmatprep.subr.bf16.mxu0 0
  %1377 = vmatpush1.bf16.msra.mxu0 0
  %1378 = vmatprep.subr.bf16.mxu0 0
  %1379 = vmatpush1.bf16.msra.mxu0 0
  %1380 = vmatprep.subr.bf16.mxu0 0
  %1381 = vmatpush1.bf16.msra.mxu0 0
  %1382 = vmatprep.subr.bf16.mxu0 %v1042
  %1383 = vmatpush1.bf16.msra.mxu0 %v1041
  %1384 = vmatprep.subr.bf16.mxu0 0
  %1385 = vmatpush2.bf16.msra.mxu0 0
  %1386 = vmatprep.subr.bf16.mxu0 0
  %1387 = vmatpush2.bf16.msra.mxu0 0
  %1388 = vmatprep.subr.bf16.mxu0 0
  %1389 = vmatpush2.bf16.msra.mxu0 0
  %1390 = vmatprep.subr.bf16.mxu0 0
  %1391 = vmatpush2.bf16.msra.mxu0 0
  %1392 = vmatprep.subr.bf16.mxu0 0
  %1393 = vmatpush2.bf16.msra.mxu0 0
  %1394 = vmatprep.subr.bf16.mxu0 0
  %1395 = vmatpush2.bf16.msra.mxu0 0
  %1396 = vmatprep.subr.bf16.mxu0 0
  %1397 = vmatpush2.bf16.msra.mxu0 0
  %1398 = vmatprep.subr.bf16.mxu0 0
  %1399 = vmatpush2.bf16.msra.mxu0 0
  %1400 = vmatprep.mubr.bf16.mxu0 0
  %1401 = vmatmul.mubr.bf16.gmra.mxu0 %v1243
  %v1402 = vpop.f32.mrf.mxu0
  %v1403 = vadd.f32 %v1362, %v1402
  %v1404 = vpop.f32.mrf.mxu0
  %v1405 = vadd.f32 %v1364, %v1404
  %v1406 = vpop.f32.mrf.mxu0
  %v1407 = vpop.f32.mrf.mxu0
  %1408 = vdwg.mxu0
  %1409 = vmatprep.subr.bf16.mxu0 %v880
  %1410 = vmatpush1.bf16.msra.mxu0 %v879
  %1411 = vmatprep.subr.bf16.mxu0 %v876
  %1412 = vmatpush1.bf16.msra.mxu0 %v875
  %1413 = vmatprep.subr.bf16.mxu0 %v872
  %1414 = vmatpush1.bf16.msra.mxu0 %v871
  %1415 = vmatprep.subr.bf16.mxu0 %v868
  %1416 = vmatpush1.bf16.msra.mxu0 %v867
  %1417 = vmatprep.subr.bf16.mxu0 %v864
  %1418 = vmatpush1.bf16.msra.mxu0 %v863
  %1419 = vmatprep.subr.bf16.mxu0 %v860
  %1420 = vmatpush1.bf16.msra.mxu0 %v859
  %1421 = vmatprep.subr.bf16.mxu0 %v856
  %1422 = vmatpush1.bf16.msra.mxu0 %v855
  %1423 = vmatprep.subr.bf16.mxu0 %v852
  %1424 = vmatpush1.bf16.msra.mxu0 %v851
  %1425 = vmatprep.subr.bf16.mxu0 %v912
  %1426 = vmatpush2.bf16.msra.mxu0 %v911
  %1427 = vmatprep.subr.bf16.mxu0 %v908
  %1428 = vmatpush2.bf16.msra.mxu0 %v907
  %1429 = vmatprep.subr.bf16.mxu0 %v904
  %1430 = vmatpush2.bf16.msra.mxu0 %v903
  %1431 = vmatprep.subr.bf16.mxu0 %v900
  %1432 = vmatpush2.bf16.msra.mxu0 %v899
  %1433 = vmatprep.subr.bf16.mxu0 %v896
  %1434 = vmatpush2.bf16.msra.mxu0 %v895
  %1435 = vmatprep.subr.bf16.mxu0 %v892
  %1436 = vmatpush2.bf16.msra.mxu0 %v891
  %1437 = vmatprep.subr.bf16.mxu0 %v888
  %1438 = vmatpush2.bf16.msra.mxu0 %v887
  %1439 = vmatprep.subr.bf16.mxu0 %v884
  %1440 = vmatpush2.bf16.msra.mxu0 %v883
  %1441 = vmatprep.mubr.bf16.mxu0 %v249
  %1442 = vmatmul.mubr.bf16.gmra.mxu0 %v248
  %v1443 = vpop.f32.mrf.mxu0
  %v1444 = vadd.f32 %v228, %v1443
  %v1445 = vpop.f32.mrf.mxu0
  %v1446 = vadd.f32 %v232, %v1445
  %v1447 = vpop.f32.mrf.mxu0
  %v1448 = vpop.f32.mrf.mxu0
  %1449 = vdwg.mxu0
  %1450 = vmatprep.subr.bf16.mxu0 %v944
  %1451 = vmatpush1.bf16.msra.mxu0 %v943
  %1452 = vmatprep.subr.bf16.mxu0 %v940
  %1453 = vmatpush1.bf16.msra.mxu0 %v939
  %1454 = vmatprep.subr.bf16.mxu0 %v936
  %1455 = vmatpush1.bf16.msra.mxu0 %v935
  %1456 = vmatprep.subr.bf16.mxu0 %v932
  %1457 = vmatpush1.bf16.msra.mxu0 %v931
  %1458 = vmatprep.subr.bf16.mxu0 %v928
  %1459 = vmatpush1.bf16.msra.mxu0 %v927
  %1460 = vmatprep.subr.bf16.mxu0 %v924
  %1461 = vmatpush1.bf16.msra.mxu0 %v923
  %1462 = vmatprep.subr.bf16.mxu0 %v920
  %1463 = vmatpush1.bf16.msra.mxu0 %v919
  %1464 = vmatprep.subr.bf16.mxu0 %v916
  %1465 = vmatpush1.bf16.msra.mxu0 %v915
  %1466 = vmatprep.subr.bf16.mxu0 %v976
  %1467 = vmatpush2.bf16.msra.mxu0 %v975
  %1468 = vmatprep.subr.bf16.mxu0 %v972
  %1469 = vmatpush2.bf16.msra.mxu0 %v971
  %1470 = vmatprep.subr.bf16.mxu0 %v968
  %1471 = vmatpush2.bf16.msra.mxu0 %v967
  %1472 = vmatprep.subr.bf16.mxu0 %v964
  %1473 = vmatpush2.bf16.msra.mxu0 %v963
  %1474 = vmatprep.subr.bf16.mxu0 %v960
  %1475 = vmatpush2.bf16.msra.mxu0 %v959
  %1476 = vmatprep.subr.bf16.mxu0 %v956
  %1477 = vmatpush2.bf16.msra.mxu0 %v955
  %1478 = vmatprep.subr.bf16.mxu0 %v952
  %1479 = vmatpush2.bf16.msra.mxu0 %v951
  %1480 = vmatprep.subr.bf16.mxu0 %v948
  %1481 = vmatpush2.bf16.msra.mxu0 %v947
  %1482 = vmatprep.mubr.bf16.mxu0 %v251
  %1483 = vmatmul.mubr.bf16.gmra.mxu0 %v250
  %v1484 = vpop.f32.mrf.mxu0
  %v1485 = vadd.f32 %v1444, %v1484
  %v1486 = vpop.f32.mrf.mxu0
  %v1487 = vadd.f32 %v1446, %v1486
  %v1488 = vpop.f32.mrf.mxu0
  %v1489 = vpop.f32.mrf.mxu0
  %1490 = vdwg.mxu0
  %1491 = vmatprep.subr.bf16.mxu0 %v1008
  %1492 = vmatpush1.bf16.msra.mxu0 %v1007
  %1493 = vmatprep.subr.bf16.mxu0 %v1004
  %1494 = vmatpush1.bf16.msra.mxu0 %v1003
  %1495 = vmatprep.subr.bf16.mxu0 %v1000
  %1496 = vmatpush1.bf16.msra.mxu0 %v999
  %1497 = vmatprep.subr.bf16.mxu0 %v996
  %1498 = vmatpush1.bf16.msra.mxu0 %v995
  %1499 = vmatprep.subr.bf16.mxu0 %v992
  %1500 = vmatpush1.bf16.msra.mxu0 %v991
  %1501 = vmatprep.subr.bf16.mxu0 %v988
  %1502 = vmatpush1.bf16.msra.mxu0 %v987
  %1503 = vmatprep.subr.bf16.mxu0 %v984
  %1504 = vmatpush1.bf16.msra.mxu0 %v983
  %1505 = vmatprep.subr.bf16.mxu0 %v980
  %1506 = vmatpush1.bf16.msra.mxu0 %v979
  %1507 = vmatprep.subr.bf16.mxu0 %v1040
  %1508 = vmatpush2.bf16.msra.mxu0 %v1039
  %1509 = vmatprep.subr.bf16.mxu0 %v1036
  %1510 = vmatpush2.bf16.msra.mxu0 %v1035
  %1511 = vmatprep.subr.bf16.mxu0 %v1032
  %1512 = vmatpush2.bf16.msra.mxu0 %v1031
  %1513 = vmatprep.subr.bf16.mxu0 %v1028
  %1514 = vmatpush2.bf16.msra.mxu0 %v1027
  %1515 = vmatprep.subr.bf16.mxu0 %v1024
  %1516 = vmatpush2.bf16.msra.mxu0 %v1023
  %1517 = vmatprep.subr.bf16.mxu0 %v1020
  %1518 = vmatpush2.bf16.msra.mxu0 %v1019
  %1519 = vmatprep.subr.bf16.mxu0 %v1016
  %1520 = vmatpush2.bf16.msra.mxu0 %v1015
  %1521 = vmatprep.subr.bf16.mxu0 %v1012
  %1522 = vmatpush2.bf16.msra.mxu0 %v1011
  %1523 = vmatprep.mubr.bf16.mxu0 %v253
  %1524 = vmatmul.mubr.bf16.gmra.mxu0 %v252
  %v1525 = vpop.f32.mrf.mxu0
  %v1526 = vadd.f32 %v1485, %v1525
  %v1527 = vpop.f32.mrf.mxu0
  %v1528 = vadd.f32 %v1487, %v1527
  %v1529 = vpop.f32.mrf.mxu0
  %v1530 = vpop.f32.mrf.mxu0
  %1531 = vdwg.mxu0
  %1532 = vmatprep.subr.bf16.mxu0 0
  %1533 = vmatpush1.bf16.msra.mxu0 0
  %1534 = vmatprep.subr.bf16.mxu0 0
  %1535 = vmatpush1.bf16.msra.mxu0 0
  %1536 = vmatprep.subr.bf16.mxu0 0
  %1537 = vmatpush1.bf16.msra.mxu0 0
  %1538 = vmatprep.subr.bf16.mxu0 0
  %1539 = vmatpush1.bf16.msra.mxu0 0
  %1540 = vmatprep.subr.bf16.mxu0 0
  %1541 = vmatpush1.bf16.msra.mxu0 0
  %1542 = vmatprep.subr.bf16.mxu0 0
  %1543 = vmatpush1.bf16.msra.mxu0 0
  %1544 = vmatprep.subr.bf16.mxu0 0
  %1545 = vmatpush1.bf16.msra.mxu0 0
  %1546 = vmatprep.subr.bf16.mxu0 %v1044
  %1547 = vmatpush1.bf16.msra.mxu0 %v1043
  %1548 = vmatprep.subr.bf16.mxu0 0
  %1549 = vmatpush2.bf16.msra.mxu0 0
  %1550 = vmatprep.subr.bf16.mxu0 0
  %1551 = vmatpush2.bf16.msra.mxu0 0
  %1552 = vmatprep.subr.bf16.mxu0 0
  %1553 = vmatpush2.bf16.msra.mxu0 0
  %1554 = vmatprep.subr.bf16.mxu0 0
  %1555 = vmatpush2.bf16.msra.mxu0 0
  %1556 = vmatprep.subr.bf16.mxu0 0
  %1557 = vmatpush2.bf16.msra.mxu0 0
  %1558 = vmatprep.subr.bf16.mxu0 0
  %1559 = vmatpush2.bf16.msra.mxu0 0
  %1560 = vmatprep.subr.bf16.mxu0 0
  %1561 = vmatpush2.bf16.msra.mxu0 0
  %1562 = vmatprep.subr.bf16.mxu0 0
  %1563 = vmatpush2.bf16.msra.mxu0 0
  %1564 = vmatprep.mubr.bf16.mxu0 0
  %1565 = vmatmul.mubr.bf16.gmra.mxu0 %v1243
  %v1566 = vpop.f32.mrf.mxu0
  %v1567 = vadd.f32 %v1526, %v1566
  %v1568 = vpop.f32.mrf.mxu0
  %v1569 = vadd.f32 %v1528, %v1568
  %v1570 = vpop.f32.mrf.mxu0
  %v1571 = vpop.f32.mrf.mxu0
  %1572 = vdwg.mxu0
  %v1573 = vmax.f32 %v1403, 0.0
  %v1574 = vmax.f32 %v1405, 0.0
  %v1575 = vmax.f32 %v1567, 0.0
  %v1576 = vmax.f32 %v1569, 0.0
  %1577 = vst [vmem:[%s3] sm:$0xff] %v1573
  %1578 = vst [vmem:[%s3 + $0x8] sm:$0xff] %v1574
  %1579 = vst [vmem:[%s3 + $0x10] sm:$0xff] %v1575
  %1580 = vst [vmem:[%s3 + $0x18] sm:$0xff] %v1576
  // Predicated region
  $region14: #{neural_network1_forward.1} parent=0 // pred_check
    _
  $region15: #{neural_network1_forward.1} parent=0 // pred_check_branch
    %1582 = sbr.rel (0) target = $region17
  $region16: #{neural_network1_forward.1} parent=0 // pred_region
    _
  $region17: #{neural_network1_forward.1} parent=0 // pred_fallthru
    _
  // Predicated region
  $region18: #{neural_network1_forward.1} parent=0 // pred_check
    _
  $region19: #{neural_network1_forward.1} parent=0 // pred_check_branch
    %1584 = sbr.rel (0) target = $region21
  $region20: #{neural_network1_forward.1} parent=0 // pred_region
    _
  $region21: #{neural_network1_forward.1} parent=0 // pred_fallthru
    _

</llo_original>
